<compile_context>
chip_gen: v7x
topology: tpu7x:2x2x1
jax: 0.10.0
libtpu: 0.0.40
codegen_flags: <defaults>
</compile_context>

<pallas_src>
import jax
import jax.numpy as jnp
from jax.experimental import pallas as pl
from jax.experimental.pallas import tpu as pltpu


_VMEM_LIMIT_BYTES = 48 << 20    # explicit scoped-VMEM limit (< v7x 64 MiB physical)
_VMEM_BUDGET_BYTES = 26 << 20   # budget used to size the streamed batch tile


def _round_up(x, m):
    return (x + m - 1) // m * m


def _cdiv(a, b):
    return (a + b - 1) // b


def _mlp_kernel(x_ref, w1_ref, b1_ref, w2_ref, b2_ref, wh_ref, bh_ref, out_ref):
    # Raw pixels -> bf16 in a single cast (exact for 0..255); /255 folded into W1.
    x = x_ref[...].astype(jnp.bfloat16)

    h1 = jnp.dot(x, w1_ref[...], preferred_element_type=jnp.float32)
    h1 = jnp.maximum(h1 + b1_ref[...], 0.0)

    h2 = jnp.dot(h1.astype(jnp.bfloat16), w2_ref[...],
                 preferred_element_type=jnp.float32)
    h2 = jnp.maximum(h2 + b2_ref[...], 0.0)

    # Fused policy+value head -> one MXU op, one lane-dense 128-wide store.
    out = jnp.dot(h2.astype(jnp.bfloat16), wh_ref[...],
                  preferred_element_type=jnp.float32) + bh_ref[...]
    out_ref[...] = out.astype(out_ref.dtype)


def init_params(key, obs_dim, num_outputs):
    """nn.Linear default init (uniform +/- 1/sqrt(fan_in)); weights stored
    already transposed to [in, out]."""
    def linear(key, fan_in, fan_out):
        kw, kb = jax.random.split(key)
        bound = 1.0 / jnp.sqrt(fan_in)
        w = jax.random.uniform(kw, (fan_in, fan_out), jnp.float32, -bound, bound)
        b = jax.random.uniform(kb, (1, fan_out), jnp.float32, -bound, bound)
        return w, b

    k1, k2, k3, k4 = jax.random.split(key, 4)
    w1, b1 = linear(k1, obs_dim, 128)
    w2, b2 = linear(k2, 128, 32)
    wp, bp = linear(k3, 32, num_outputs)
    wv, bv = linear(k4, 32, 1)
    return (w1, b1, w2, b2, wp, bp, wv, bv)


def prepare_params(params_f32):
    """One-time parameter prep for the kernel:
       * fold 1/255 into W1 (b1 untouched),
       * cast weights to bf16 for the MXU,
       * fuse policy/value heads and pad the head width to 128 lanes."""
    w1, b1, w2, b2, wp, bp, wv, bv = params_f32
    num_outputs = wp.shape[1]
    head_w = _round_up(num_outputs + 1, 128)

    w1k = (w1 * (1.0 / 255.0)).astype(jnp.bfloat16)   # fold /255 exactly once
    w2k = w2.astype(jnp.bfloat16)

    wh = jnp.zeros((wp.shape[0], head_w), jnp.float32)
    wh = wh.at[:, :num_outputs].set(wp)
    wh = wh.at[:, num_outputs:num_outputs + 1].set(wv)
    bh = jnp.zeros((1, head_w), jnp.float32)
    bh = bh.at[:, :num_outputs].set(bp)
    bh = bh.at[:, num_outputs:num_outputs + 1].set(bv)

    return dict(
        w1=w1k, b1=b1.astype(jnp.float32),
        w2=w2k, b2=b2.astype(jnp.float32),
        wh=wh.astype(jnp.bfloat16), bh=bh,
        num_outputs=num_outputs, head_w=head_w,
    )


def _choose_tm(batch, d, head_w, out_bytes, *, tm_cap=4096,
               vmem_budget_bytes=_VMEM_BUDGET_BYTES):
    """Rows per grid step, sized per obs width D against a VMEM budget that is
    safe on v5e/v6e/v7x, and capped so the 'parallel' batch axis spans >=2
    grid steps (both v7x TensorCores) whenever B allows it."""
    # VMEM-resident params; counted double-buffered so the budget is safe even
    # if the single-buffer hint were ignored.
    fixed = 2 * (d * 128 * 2 + 128 * 32 * 2 + 32 * head_w * 2
                 + (128 + 32 + head_w) * 4)
    # Per-batch-row streamed / intermediate bytes:
    #   2*D   uint8 x tile (double-buffered)
    #   2*D   in-kernel bf16 copy of x (matmul LHS)
    #   2*head_w*out_bytes  output tile (double-buffered)
    #   ~3 KiB h1/h2/out intermediates (f32 + bf16)
    per_row = 2 * d + 2 * d + 2 * head_w * out_bytes + 6 * 128 * 4
    tm = max(32, (vmem_budget_bytes - fixed) // per_row // 32 * 32)
    tm = min(tm, tm_cap)                 # amortize per-step pipeline overhead
    tm = min(tm, max(32, _round_up(_cdiv(batch, 2), 32)))   # >=2 steps if possible
    return int(tm)


def simple_mlp_forward(obs, prepped, *, out_dtype=jnp.bfloat16, tm_cap=4096):
    """obs: [B, C, H, W] RAW uint8 pixels (0..255).
    Returns (policy_logits [B, num_outputs] f32, value [B] f32)."""
    if obs.dtype != jnp.uint8:
        raise ValueError(
            "simple_mlp_forward expects raw uint8 pixels; the 1/255 "
            "normalization is folded into W1, so pre-normalized float obs "
            "would be double-normalized.")

    B = obs.shape[0]
    x_flat = obs.reshape(B, -1)                 # nn.Flatten(start_dim=1)
    D = x_flat.shape[1]

    num_outputs = prepped["num_outputs"]
    head_w = prepped["head_w"]
    out_bytes = jnp.dtype(out_dtype).itemsize

    tm = _choose_tm(B, D, head_w, out_bytes, tm_cap=tm_cap)
    grid_m = pl.cdiv(B, tm)                     # ragged tail handled by DMA clipping

    resident = dict(pipeline_mode=pl.Buffered(1))   # fetched once, single buffer
    out = pl.pallas_call(
        _mlp_kernel,
        out_shape=jax.ShapeDtypeStruct((B, head_w), out_dtype),
        grid=(grid_m,),
        in_specs=[
            pl.BlockSpec((tm, D), lambda i: (i, 0)),                   # x: streamed
            pl.BlockSpec((D, 128), lambda i: (0, 0), **resident),      # W1
            pl.BlockSpec((1, 128), lambda i: (0, 0), **resident),      # b1
            pl.BlockSpec((128, 32), lambda i: (0, 0), **resident),     # W2
            pl.BlockSpec((1, 32), lambda i: (0, 0), **resident),       # b2
            pl.BlockSpec((32, head_w), lambda i: (0, 0), **resident),  # fused head W
            pl.BlockSpec((1, head_w), lambda i: (0, 0), **resident),   # fused head b
        ],
        out_specs=pl.BlockSpec((tm, head_w), lambda i: (i, 0)),
        compiler_params=pltpu.CompilerParams(
            dimension_semantics=("parallel",),
            vmem_limit_bytes=_VMEM_LIMIT_BYTES),
    )(x_flat, prepped["w1"], prepped["b1"], prepped["w2"], prepped["b2"],
      prepped["wh"], prepped["bh"])

    policy = out[:, :num_outputs].astype(jnp.float32)
    value = out[:, num_outputs].astype(jnp.float32)   # value_function() -> flattened
    return policy, value


def reference_forward(obs, params_f32):
    """Pure-JAX fp32 reference of the torch module."""
    w1, b1, w2, b2, wp, bp, wv, bv = params_f32
    x = obs.reshape(obs.shape[0], -1).astype(jnp.float32) / 255.0
    h1 = jnp.maximum(x @ w1 + b1, 0.0)
    h2 = jnp.maximum(h1 @ w2 + b2, 0.0)
    return h2 @ wp + bp, (h2 @ wv + bv).reshape(-1)


if __name__ == "__main__":
    key = jax.random.PRNGKey(0)
    k_obs, k_params = jax.random.split(key)

    # Small module-consistent shapes: batch=2, obs space Box(C=4, H=16, W=16).
    B, C, H, W = 2, 4, 16, 16
    num_outputs = 8
    obs_dim = C * H * W  # 1024

    obs = jax.random.randint(k_obs, (B, C, H, W), 0, 256,
                             dtype=jnp.int32).astype(jnp.uint8)
    params = init_params(k_params, obs_dim, num_outputs)
    prepped = prepare_params(params)

    policy, value = simple_mlp_forward(obs, prepped)
    jax.block_until_ready((policy, value))

    assert policy.shape == (B, num_outputs)
    assert value.shape == (B,)

    # Loose tolerance: bf16 MXU operands + bf16 output slab => ~1e-3 abs error.
    ref_policy, ref_value = reference_forward(obs, params)
    assert jnp.allclose(policy, ref_policy, rtol=5e-2, atol=5e-2)
    assert jnp.allclose(value, ref_value, rtol=5e-2, atol=5e-2)

    print("KERNEL_OK")
</pallas_src>

<mosaic_0001>
module attributes {stable_mosaic.version = 11 : i64} {
  func.func @_mlp_kernel(%arg0: i32, %arg1: memref<32x1024xi8, #tpu.memory_space<vmem>>, %arg2: memref<1024x128xbf16, #tpu.memory_space<vmem>>, %arg3: memref<1x128xf32, #tpu.memory_space<vmem>>, %arg4: memref<128x32xbf16, #tpu.memory_space<vmem>>, %arg5: memref<1x32xf32, #tpu.memory_space<vmem>>, %arg6: memref<32x128xbf16, #tpu.memory_space<vmem>>, %arg7: memref<1x128xf32, #tpu.memory_space<vmem>>, %arg8: memref<32x128xbf16, #tpu.memory_space<vmem>>) attributes {dimension_semantics = [#tpu.dimension_semantics<parallel>], iteration_bounds = array<i64: 1>, scalar_prefetch = 0 : i64, scratch_operands = 0 : i64, tpu.core_type = #tpu.core_type<tc>, window_params = [{transform_indices = @transform_0, window_bounds = array<i64: 32, 1024>}, {pipeline_mode = #tpu.pipeline_mode<synchronous>, transform_indices = @transform_1, window_bounds = array<i64: 1024, 128>}, {pipeline_mode = #tpu.pipeline_mode<synchronous>, transform_indices = @transform_2, window_bounds = array<i64: 1, 128>}, {pipeline_mode = #tpu.pipeline_mode<synchronous>, transform_indices = @transform_3, window_bounds = array<i64: 128, 32>}, {pipeline_mode = #tpu.pipeline_mode<synchronous>, transform_indices = @transform_4, window_bounds = array<i64: 1, 32>}, {pipeline_mode = #tpu.pipeline_mode<synchronous>, transform_indices = @transform_5, window_bounds = array<i64: 32, 128>}, {pipeline_mode = #tpu.pipeline_mode<synchronous>, transform_indices = @transform_6, window_bounds = array<i64: 1, 128>}, {transform_indices = @transform_7, window_bounds = array<i64: 32, 128>}]} {
    %c0 = arith.constant 0 : index
    %c0_0 = arith.constant 0 : index
    %0 = vector.load %arg1[%c0, %c0_0] : memref<32x1024xi8, #tpu.memory_space<vmem>>, vector<32x1024xi8>
    %1 = arith.uitofp %0 : vector<32x1024xi8> to vector<32x1024xbf16>
    %c0_1 = arith.constant 0 : index
    %c0_2 = arith.constant 0 : index
    %2 = vector.load %arg2[%c0_1, %c0_2] : memref<1024x128xbf16, #tpu.memory_space<vmem>>, vector<1024x128xbf16>
    %cst = arith.constant dense<0.000000e+00> : vector<32x128xf32>
    %3 = tpu.matmul %1, %2, %cst {dimension_numbers = #tpu.dot_dimension_numbers<[1], [0], [0], [1], [0, 0, 1, 1], [], []>} : vector<32x1024xbf16>, vector<1024x128xbf16>, vector<32x128xf32> -> vector<32x128xf32>
    %c0_3 = arith.constant 0 : index
    %c0_4 = arith.constant 0 : index
    %4 = vector.load %arg3[%c0_3, %c0_4] : memref<1x128xf32, #tpu.memory_space<vmem>>, vector<1x128xf32>
    %5 = vector.broadcast %4 : vector<1x128xf32> to vector<32x128xf32>
    %6 = arith.addf %3, %5 : vector<32x128xf32>
    %cst_5 = arith.constant 0.000000e+00 : f32
    %7 = vector.broadcast %cst_5 : f32 to vector<32x128xf32>
    %8 = arith.maximumf %6, %7 : vector<32x128xf32>
    %9 = arith.truncf %8 : vector<32x128xf32> to vector<32x128xbf16>
    %c0_6 = arith.constant 0 : index
    %c0_7 = arith.constant 0 : index
    %10 = vector.load %arg4[%c0_6, %c0_7] : memref<128x32xbf16, #tpu.memory_space<vmem>>, vector<128x32xbf16>
    %cst_8 = arith.constant dense<0.000000e+00> : vector<32x32xf32>
    %11 = tpu.matmul %9, %10, %cst_8 {dimension_numbers = #tpu.dot_dimension_numbers<[1], [0], [0], [1], [0, 0, 1, 1], [], []>} : vector<32x128xbf16>, vector<128x32xbf16>, vector<32x32xf32> -> vector<32x32xf32>
    %c0_9 = arith.constant 0 : index
    %c0_10 = arith.constant 0 : index
    %12 = vector.load %arg5[%c0_9, %c0_10] : memref<1x32xf32, #tpu.memory_space<vmem>>, vector<1x32xf32>
    %13 = vector.broadcast %12 : vector<1x32xf32> to vector<32x32xf32>
    %14 = arith.addf %11, %13 : vector<32x32xf32>
    %cst_11 = arith.constant 0.000000e+00 : f32
    %15 = vector.broadcast %cst_11 : f32 to vector<32x32xf32>
    %16 = arith.maximumf %14, %15 : vector<32x32xf32>
    %17 = arith.truncf %16 : vector<32x32xf32> to vector<32x32xbf16>
    %c0_12 = arith.constant 0 : index
    %c0_13 = arith.constant 0 : index
    %18 = vector.load %arg6[%c0_12, %c0_13] : memref<32x128xbf16, #tpu.memory_space<vmem>>, vector<32x128xbf16>
    %cst_14 = arith.constant dense<0.000000e+00> : vector<32x128xf32>
    %19 = tpu.matmul %17, %18, %cst_14 {dimension_numbers = #tpu.dot_dimension_numbers<[1], [0], [0], [1], [0, 0, 1, 1], [], []>} : vector<32x32xbf16>, vector<32x128xbf16>, vector<32x128xf32> -> vector<32x128xf32>
    %c0_15 = arith.constant 0 : index
    %c0_16 = arith.constant 0 : index
    %20 = vector.load %arg7[%c0_15, %c0_16] : memref<1x128xf32, #tpu.memory_space<vmem>>, vector<1x128xf32>
    %21 = vector.broadcast %20 : vector<1x128xf32> to vector<32x128xf32>
    %22 = arith.addf %19, %21 : vector<32x128xf32>
    %23 = arith.truncf %22 : vector<32x128xf32> to vector<32x128xbf16>
    %c0_17 = arith.constant 0 : index
    %c0_18 = arith.constant 0 : index
    %24 = vector.load %arg8[%c0_17, %c0_18] : memref<32x128xbf16, #tpu.memory_space<vmem>>, vector<32x128xbf16>
    tpu.vector_store %arg8[%c0_17, %c0_18], %23 {strides = array<i32>} : memref<32x128xbf16, #tpu.memory_space<vmem>>, vector<32x128xbf16>,
    return
  }
  func.func @transform_0(%arg0: i32) -> (i32, i32) {
    %c0_i32 = arith.constant 0 : i32
    %c0_i32_0 = arith.constant 0 : i32
    return %arg0, %c0_i32 : i32, i32
  }
  func.func @transform_1(%arg0: i32) -> (i32, i32) {
    %c0_i32 = arith.constant 0 : i32
    %c0_i32_0 = arith.constant 0 : i32
    %c0_i32_1 = arith.constant 0 : i32
    return %c0_i32, %c0_i32_0 : i32, i32
  }
  func.func @transform_2(%arg0: i32) -> (i32, i32) {
    %c0_i32 = arith.constant 0 : i32
    %c0_i32_0 = arith.constant 0 : i32
    %c0_i32_1 = arith.constant 0 : i32
    return %c0_i32, %c0_i32_0 : i32, i32
  }
  func.func @transform_3(%arg0: i32) -> (i32, i32) {
    %c0_i32 = arith.constant 0 : i32
    %c0_i32_0 = arith.constant 0 : i32
    %c0_i32_1 = arith.constant 0 : i32
    return %c0_i32, %c0_i32_0 : i32, i32
  }
  func.func @transform_4(%arg0: i32) -> (i32, i32) {
    %c0_i32 = arith.constant 0 : i32
    %c0_i32_0 = arith.constant 0 : i32
    %c0_i32_1 = arith.constant 0 : i32
    return %c0_i32, %c0_i32_0 : i32, i32
  }
  func.func @transform_5(%arg0: i32) -> (i32, i32) {
    %c0_i32 = arith.constant 0 : i32
    %c0_i32_0 = arith.constant 0 : i32
    %c0_i32_1 = arith.constant 0 : i32
    return %c0_i32, %c0_i32_0 : i32, i32
  }
  func.func @transform_6(%arg0: i32) -> (i32, i32) {
    %c0_i32 = arith.constant 0 : i32
    %c0_i32_0 = arith.constant 0 : i32
    %c0_i32_1 = arith.constant 0 : i32
    return %c0_i32, %c0_i32_0 : i32, i32
  }
  func.func @transform_7(%arg0: i32) -> (i32, i32) {
    %c0_i32 = arith.constant 0 : i32
    %c0_i32_0 = arith.constant 0 : i32
    return %arg0, %c0_i32 : i32, i32
  }
}

</mosaic_0001>

<llo_original>
// kernel: tpu_custom_call.1
$region0: #{tpu_custom_call.1}
  #allocation0 [shape = 'u32[]', space=smem, size = 0x4, offset = 0x4, fixed_abs, tag = 'smem constant byte address 0x4 - core index']
  #allocation1 [shape = 'u32[144,128]{1,0:T(1,128)}', space=vmem, size = 0x12000, scoped, tag = 'internal scratch']
  %s0 = inlined_call_operand.vmem [shape: u8[2,1024], index: 0, kind: input, shape index: {}]
  %s1 = inlined_call_operand.hbm [shape: bf16[1024,128], index: 1, kind: input, shape index: {}]
  %s2 = inlined_call_operand.vmem [shape: f32[1,128], index: 2, kind: input, shape index: {}]
  %s3 = inlined_call_operand.vmem [shape: bf16[128,32], index: 3, kind: input, shape index: {}]
  %s4 = inlined_call_operand.vmem [shape: f32[1,32], index: 4, kind: input, shape index: {}]
  %s5 = inlined_call_operand.vmem [shape: bf16[32,128], index: 5, kind: input, shape index: {}]
  %s6 = inlined_call_operand.vmem [shape: f32[1,128], index: 6, kind: input, shape index: {}]
  %s7 = inlined_call_operand.hbm [shape: bf16[2,128], index: 7, kind: output, shape index: {}]
  %s8 = sld [smem:[#allocation0]]
  $region42: #{tpu_custom_call.1} parent=0
    _
  %s10 = ssub.s32 1, %s8
  %s11 = scalar_select 0, %s10, %s8
  $region1: #{tpu_custom_call.1} parent=0
    #allocation2 [shape = 'u8[262144]{0}', space=vmem, size = 0x40000, scoped, tag = 'input window, operand 1, single buffered']
    #allocation3 [shape = 's32[1]{0}', space=sflag, size = 0x4, scoped, tag = 'scoped memory for tpu_custom_call.1']
    #allocation4 [shape = 's32[1]{0}', space=sflag, size = 0x4, scoped, tag = 'scoped memory for tpu_custom_call.1']
    #allocation5 [shape = 'u8[8192]{0}', space=vmem, size = 0x2000, scoped, tag = 'output window, operand 0, single buffered']
    %12 = vsyncpa [#allocation3], 0
    %13 = vsyncpa [#allocation4], 0
    // Predicated region
    $region2: #{tpu_custom_call.1} parent=1 // pred_check
      _
    $region3: #{tpu_custom_call.1} parent=1 // pred_check_branch
      %15 = sbr.rel (0) target = $region5
    $region4: #{tpu_custom_call.1} parent=1 // pred_region
      _
    $region5: #{tpu_custom_call.1} parent=1 // pred_fallthru
      _
    // Predicated region
    $region6: #{tpu_custom_call.1} parent=1 // pred_check
      _
    $region7: #{tpu_custom_call.1} parent=1 // pred_check_branch
      %17 = sbr.rel (0) target = $region9
    $region8: #{tpu_custom_call.1} parent=1 // pred_region
      %s19 = ssub.s32 8192, 8192
      %20 = vsyncadd [#allocation3], %s19
      %s21 = sshll.u32 [#allocation2], 4
      %s22 = int_to_ptr.vmem [resolvable:$true] %s21
      %27 = dma.hbm_to_vmem [thread:$0]  %s1, 8192, %s22, [#allocation3], 64, 64, 4
    $region9: #{tpu_custom_call.1} parent=1 // pred_fallthru
      _
    // Predicated region
    $region10: #{tpu_custom_call.1} parent=1 // pred_check
      _
    $region11: #{tpu_custom_call.1} parent=1 // pred_check_branch
      %29 = sbr.rel (0) target = $region13
    $region12: #{tpu_custom_call.1} parent=1 // pred_region
      _
    $region13: #{tpu_custom_call.1} parent=1 // pred_fallthru
      _
    // Predicated region
    $region14: #{tpu_custom_call.1} parent=1 // pred_check
      _
    $region15: #{tpu_custom_call.1} parent=1 // pred_check_branch
      %31 = sbr.rel (0) target = $region17
    $region16: #{tpu_custom_call.1} parent=1 // pred_region
      _
    $region17: #{tpu_custom_call.1} parent=1 // pred_fallthru
      _
    // Predicated region
    $region18: #{tpu_custom_call.1} parent=1 // pred_check
      _
    $region19: #{tpu_custom_call.1} parent=1 // pred_check_branch
      %33 = sbr.rel (0) target = $region21
    $region20: #{tpu_custom_call.1} parent=1 // pred_region
      _
    $region21: #{tpu_custom_call.1} parent=1 // pred_fallthru
      _
    // Predicated region
    $region22: #{tpu_custom_call.1} parent=1 // pred_check
      _
    $region23: #{tpu_custom_call.1} parent=1 // pred_check_branch
      %35 = sbr.rel (0) target = $region25
    $region24: #{tpu_custom_call.1} parent=1 // pred_region
      _
    $region25: #{tpu_custom_call.1} parent=1 // pred_fallthru
      _
    // Predicated region
    $region26: #{tpu_custom_call.1} parent=1 // pred_check
      _
    $region27: #{tpu_custom_call.1} parent=1 // pred_check_branch
      %37 = sbr.rel (0) target = $region29
    $region28: #{tpu_custom_call.1} parent=1 // pred_region
      _
    $region29: #{tpu_custom_call.1} parent=1 // pred_fallthru
      _
    // Predicated region
    $region30: #{tpu_custom_call.1} parent=1 // pred_check
      _
    $region31: #{tpu_custom_call.1} parent=1 // pred_check_branch
      %39 = sbr.rel (0) target = $region33
    $region32: #{tpu_custom_call.1} parent=1 // pred_region
      %40 = dma.done [#allocation3], 8192
    $region33: #{tpu_custom_call.1} parent=1 // pred_fallthru
      _
    %v42 = vld [vmem:[%s0] sm:$0xff]
    %v43 = vld [vmem:[%s0 + $0x8] sm:$0xff]
    %v44 = vld [vmem:[%s0 + $0x10] sm:$0xff]
    %v45 = vld [vmem:[%s0 + $0x18] sm:$0xff]
    %v46 = vld [vmem:[%s0 + $0x20] sm:$0xff]
    %v47 = vld [vmem:[%s0 + $0x28] sm:$0xff]
    %v48 = vld [vmem:[%s0 + $0x30] sm:$0xff]
    %v49 = vld [vmem:[%s0 + $0x38] sm:$0xff]
    %v50 = vcombine.low %v42, %v43
    %v51 = vcombine.high %v42, %v43
    %v53 = vunpack.c.l.s4 1935823168
    %v54 = vunpack.c.0.s8 %v53
    %v55 = vlaneseq
    %v56 = vshrl.u32 %v55, 7
    %v57 = vsub.s32 %v54, %v56
    %v58 = vrot.slane %v50, %v57
    %v60 = vunpack.c.l.s4 1935823168
    %v61 = vunpack.c.0.s8 %v60
    %v62 = vlaneseq
    %v63 = vshrl.u32 %v62, 7
    %v64 = vsub.s32 %v61, %v63
    %v65 = vrot.slane %v51, %v64
    %v66 = vcombine.low %v44, %v45
    %v67 = vcombine.high %v44, %v45
    %v69 = vunpack.c.l.s4 1935823168
    %v70 = vunpack.c.0.s8 %v69
    %v71 = vlaneseq
    %v72 = vshrl.u32 %v71, 7
    %v73 = vsub.s32 %v70, %v72
    %v74 = vrot.slane %v66, %v73
    %v76 = vunpack.c.l.s4 1935823168
    %v77 = vunpack.c.0.s8 %v76
    %v78 = vlaneseq
    %v79 = vshrl.u32 %v78, 7
    %v80 = vsub.s32 %v77, %v79
    %v81 = vrot.slane %v67, %v80
    %v82 = vcombine.low %v46, %v47
    %v83 = vcombine.high %v46, %v47
    %v85 = vunpack.c.l.s4 1935823168
    %v86 = vunpack.c.0.s8 %v85
    %v87 = vlaneseq
    %v88 = vshrl.u32 %v87, 7
    %v89 = vsub.s32 %v86, %v88
    %v90 = vrot.slane %v82, %v89
    %v92 = vunpack.c.l.s4 1935823168
    %v93 = vunpack.c.0.s8 %v92
    %v94 = vlaneseq
    %v95 = vshrl.u32 %v94, 7
    %v96 = vsub.s32 %v93, %v95
    %v97 = vrot.slane %v83, %v96
    %v98 = vcombine.low %v48, %v49
    %v99 = vcombine.high %v48, %v49
    %v101 = vunpack.c.l.s4 1935823168
    %v102 = vunpack.c.0.s8 %v101
    %v103 = vlaneseq
    %v104 = vshrl.u32 %v103, 7
    %v105 = vsub.s32 %v102, %v104
    %v106 = vrot.slane %v98, %v105
    %v108 = vunpack.c.l.s4 1935823168
    %v109 = vunpack.c.0.s8 %v108
    %v110 = vlaneseq
    %v111 = vshrl.u32 %v110, 7
    %v112 = vsub.s32 %v109, %v111
    %v113 = vrot.slane %v99, %v112
    %v114 = vunpack.c.l.u8.bf16 %v58
    %v115 = vunpack.c.h.u8.bf16 %v58
    %v116 = vunpack.c.l.u8.bf16 %v65
    %v117 = vunpack.c.h.u8.bf16 %v65
    %v118 = vunpack.c.l.u8.bf16 %v74
    %v119 = vunpack.c.h.u8.bf16 %v74
    %v120 = vunpack.c.l.u8.bf16 %v81
    %v121 = vunpack.c.h.u8.bf16 %v81
    %v122 = vunpack.c.l.u8.bf16 %v90
    %v123 = vunpack.c.h.u8.bf16 %v90
    %v124 = vunpack.c.l.u8.bf16 %v97
    %v125 = vunpack.c.h.u8.bf16 %v97
    %v126 = vunpack.c.l.u8.bf16 %v106
    %v127 = vunpack.c.h.u8.bf16 %v106
    %v128 = vunpack.c.l.u8.bf16 %v113
    %v129 = vunpack.c.h.u8.bf16 %v113
    %v130 = vld [vmem:[#allocation2] sm:$0xf]
    %v131 = vld [vmem:[#allocation2 + $0x4] sm:$0xf]
    %v132 = vld [vmem:[#allocation2 + $0x8] sm:$0xf]
    %v133 = vld [vmem:[#allocation2 + $0xc] sm:$0xf]
    %v134 = vld [vmem:[#allocation2 + $0x10] sm:$0xf]
    %v135 = vld [vmem:[#allocation2 + $0x14] sm:$0xf]
    %v136 = vld [vmem:[#allocation2 + $0x18] sm:$0xf]
    %v137 = vld [vmem:[#allocation2 + $0x1c] sm:$0xf]
    %v138 = vld [vmem:[#allocation2 + $0x20] sm:$0xf]
    %v139 = vld [vmem:[#allocation2 + $0x24] sm:$0xf]
    %v140 = vld [vmem:[#allocation2 + $0x28] sm:$0xf]
    %v141 = vld [vmem:[#allocation2 + $0x2c] sm:$0xf]
    %v142 = vld [vmem:[#allocation2 + $0x30] sm:$0xf]
    %v143 = vld [vmem:[#allocation2 + $0x34] sm:$0xf]
    %v144 = vld [vmem:[#allocation2 + $0x38] sm:$0xf]
    %v145 = vld [vmem:[#allocation2 + $0x3c] sm:$0xf]
    %v146 = vld [vmem:[#allocation2 + $0x40] sm:$0xf]
    %v147 = vld [vmem:[#allocation2 + $0x44] sm:$0xf]
    %v148 = vld [vmem:[#allocation2 + $0x48] sm:$0xf]
    %v149 = vld [vmem:[#allocation2 + $0x4c] sm:$0xf]
    %v150 = vld [vmem:[#allocation2 + $0x50] sm:$0xf]
    %v151 = vld [vmem:[#allocation2 + $0x54] sm:$0xf]
    %v152 = vld [vmem:[#allocation2 + $0x58] sm:$0xf]
    %v153 = vld [vmem:[#allocation2 + $0x5c] sm:$0xf]
    %v154 = vld [vmem:[#allocation2 + $0x60] sm:$0xf]
    %v155 = vld [vmem:[#allocation2 + $0x64] sm:$0xf]
    %v156 = vld [vmem:[#allocation2 + $0x68] sm:$0xf]
    %v157 = vld [vmem:[#allocation2 + $0x6c] sm:$0xf]
    %v158 = vld [vmem:[#allocation2 + $0x70] sm:$0xf]
    %v159 = vld [vmem:[#allocation2 + $0x74] sm:$0xf]
    %v160 = vld [vmem:[#allocation2 + $0x78] sm:$0xf]
    %v161 = vld [vmem:[#allocation2 + $0x7c] sm:$0xf]
    %v162 = vld [vmem:[#allocation2 + $0x80] sm:$0xf]
    %v163 = vld [vmem:[#allocation2 + $0x84] sm:$0xf]
    %v164 = vld [vmem:[#allocation2 + $0x88] sm:$0xf]
    %v165 = vld [vmem:[#allocation2 + $0x8c] sm:$0xf]
    %v166 = vld [vmem:[#allocation2 + $0x90] sm:$0xf]
    %v167 = vld [vmem:[#allocation2 + $0x94] sm:$0xf]
    %v168 = vld [vmem:[#allocation2 + $0x98] sm:$0xf]
    %v169 = vld [vmem:[#allocation2 + $0x9c] sm:$0xf]
    %v170 = vld [vmem:[#allocation2 + $0xa0] sm:$0xf]
    %v171 = vld [vmem:[#allocation2 + $0xa4] sm:$0xf]
    %v172 = vld [vmem:[#allocation2 + $0xa8] sm:$0xf]
    %v173 = vld [vmem:[#allocation2 + $0xac] sm:$0xf]
    %v174 = vld [vmem:[#allocation2 + $0xb0] sm:$0xf]
    %v175 = vld [vmem:[#allocation2 + $0xb4] sm:$0xf]
    %v176 = vld [vmem:[#allocation2 + $0xb8] sm:$0xf]
    %v177 = vld [vmem:[#allocation2 + $0xbc] sm:$0xf]
    %v178 = vld [vmem:[#allocation2 + $0xc0] sm:$0xf]
    %v179 = vld [vmem:[#allocation2 + $0xc4] sm:$0xf]
    %v180 = vld [vmem:[#allocation2 + $0xc8] sm:$0xf]
    %v181 = vld [vmem:[#allocation2 + $0xcc] sm:$0xf]
    %v182 = vld [vmem:[#allocation2 + $0xd0] sm:$0xf]
    %v183 = vld [vmem:[#allocation2 + $0xd4] sm:$0xf]
    %v184 = vld [vmem:[#allocation2 + $0xd8] sm:$0xf]
    %v185 = vld [vmem:[#allocation2 + $0xdc] sm:$0xf]
    %v186 = vld [vmem:[#allocation2 + $0xe0] sm:$0xf]
    %v187 = vld [vmem:[#allocation2 + $0xe4] sm:$0xf]
    %v188 = vld [vmem:[#allocation2 + $0xe8] sm:$0xf]
    %v189 = vld [vmem:[#allocation2 + $0xec] sm:$0xf]
    %v190 = vld [vmem:[#allocation2 + $0xf0] sm:$0xf]
    %v191 = vld [vmem:[#allocation2 + $0xf4] sm:$0xf]
    %v192 = vld [vmem:[#allocation2 + $0xf8] sm:$0xf]
    %v193 = vld [vmem:[#allocation2 + $0xfc] sm:$0xf]
    %v194 = vld [vmem:[#allocation2 + $0x100] sm:$0xf]
    %v195 = vld [vmem:[#allocation2 + $0x104] sm:$0xf]
    %v196 = vld [vmem:[#allocation2 + $0x108] sm:$0xf]
    %v197 = vld [vmem:[#allocation2 + $0x10c] sm:$0xf]
    %v198 = vld [vmem:[#allocation2 + $0x110] sm:$0xf]
    %v199 = vld [vmem:[#allocation2 + $0x114] sm:$0xf]
    %v200 = vld [vmem:[#allocation2 + $0x118] sm:$0xf]
    %v201 = vld [vmem:[#allocation2 + $0x11c] sm:$0xf]
    %v202 = vld [vmem:[#allocation2 + $0x120] sm:$0xf]
    %v203 = vld [vmem:[#allocation2 + $0x124] sm:$0xf]
    %v204 = vld [vmem:[#allocation2 + $0x128] sm:$0xf]
    %v205 = vld [vmem:[#allocation2 + $0x12c] sm:$0xf]
    %v206 = vld [vmem:[#allocation2 + $0x130] sm:$0xf]
    %v207 = vld [vmem:[#allocation2 + $0x134] sm:$0xf]
    %v208 = vld [vmem:[#allocation2 + $0x138] sm:$0xf]
    %v209 = vld [vmem:[#allocation2 + $0x13c] sm:$0xf]
    %v210 = vld [vmem:[#allocation2 + $0x140] sm:$0xf]
    %v211 = vld [vmem:[#allocation2 + $0x144] sm:$0xf]
    %v212 = vld [vmem:[#allocation2 + $0x148] sm:$0xf]
    %v213 = vld [vmem:[#allocation2 + $0x14c] sm:$0xf]
    %v214 = vld [vmem:[#allocation2 + $0x150] sm:$0xf]
    %v215 = vld [vmem:[#allocation2 + $0x154] sm:$0xf]
    %v216 = vld [vmem:[#allocation2 + $0x158] sm:$0xf]
    %v217 = vld [vmem:[#allocation2 + $0x15c] sm:$0xf]
    %v218 = vld [vmem:[#allocation2 + $0x160] sm:$0xf]
    %v219 = vld [vmem:[#allocation2 + $0x164] sm:$0xf]
    %v220 = vld [vmem:[#allocation2 + $0x168] sm:$0xf]
    %v221 = vld [vmem:[#allocation2 + $0x16c] sm:$0xf]
    %v222 = vld [vmem:[#allocation2 + $0x170] sm:$0xf]
    %v223 = vld [vmem:[#allocation2 + $0x174] sm:$0xf]
    %v224 = vld [vmem:[#allocation2 + $0x178] sm:$0xf]
    %v225 = vld [vmem:[#allocation2 + $0x17c] sm:$0xf]
    %v226 = vld [vmem:[#allocation2 + $0x180] sm:$0xf]
    %v227 = vld [vmem:[#allocation2 + $0x184] sm:$0xf]
    %v228 = vld [vmem:[#allocation2 + $0x188] sm:$0xf]
    %v229 = vld [vmem:[#allocation2 + $0x18c] sm:$0xf]
    %v230 = vld [vmem:[#allocation2 + $0x190] sm:$0xf]
    %v231 = vld [vmem:[#allocation2 + $0x194] sm:$0xf]
    %v232 = vld [vmem:[#allocation2 + $0x198] sm:$0xf]
    %v233 = vld [vmem:[#allocation2 + $0x19c] sm:$0xf]
    %v234 = vld [vmem:[#allocation2 + $0x1a0] sm:$0xf]
    %v235 = vld [vmem:[#allocation2 + $0x1a4] sm:$0xf]
    %v236 = vld [vmem:[#allocation2 + $0x1a8] sm:$0xf]
    %v237 = vld [vmem:[#allocation2 + $0x1ac] sm:$0xf]
    %v238 = vld [vmem:[#allocation2 + $0x1b0] sm:$0xf]
    %v239 = vld [vmem:[#allocation2 + $0x1b4] sm:$0xf]
    %v240 = vld [vmem:[#allocation2 + $0x1b8] sm:$0xf]
    %v241 = vld [vmem:[#allocation2 + $0x1bc] sm:$0xf]
    %v242 = vld [vmem:[#allocation2 + $0x1c0] sm:$0xf]
    %v243 = vld [vmem:[#allocation2 + $0x1c4] sm:$0xf]
    %v244 = vld [vmem:[#allocation2 + $0x1c8] sm:$0xf]
    %v245 = vld [vmem:[#allocation2 + $0x1cc] sm:$0xf]
    %v246 = vld [vmem:[#allocation2 + $0x1d0] sm:$0xf]
    %v247 = vld [vmem:[#allocation2 + $0x1d4] sm:$0xf]
    %v248 = vld [vmem:[#allocation2 + $0x1d8] sm:$0xf]
    %v249 = vld [vmem:[#allocation2 + $0x1dc] sm:$0xf]
    %v250 = vld [vmem:[#allocation2 + $0x1e0] sm:$0xf]
    %v251 = vld [vmem:[#allocation2 + $0x1e4] sm:$0xf]
    %v252 = vld [vmem:[#allocation2 + $0x1e8] sm:$0xf]
    %v253 = vld [vmem:[#allocation2 + $0x1ec] sm:$0xf]
    %v254 = vld [vmem:[#allocation2 + $0x1f0] sm:$0xf]
    %v255 = vld [vmem:[#allocation2 + $0x1f4] sm:$0xf]
    %v256 = vld [vmem:[#allocation2 + $0x1f8] sm:$0xf]
    %v257 = vld [vmem:[#allocation2 + $0x1fc] sm:$0xf]
    %v258 = vld [vmem:[%s2] sm:$0x1]
    %v260 = vlaneseq
    %v261 = vshrl.u32 %v260, 7
    %v262 = vsub.s32 0, %v261
    %v263 = vrot.slane %v258, %v262
    %v281 = vunpack.c.l.b16 %v114
    %v282 = vunpack.c.h.b16 %v114
    %v283 = vunpack.c.l.b16 %v115
    %v284 = vunpack.c.h.b16 %v115
    %v285 = vunpack.c.l.b16 %v116
    %v286 = vunpack.c.h.b16 %v116
    %v287 = vunpack.c.l.b16 %v117
    %v288 = vunpack.c.h.b16 %v117
    %v289 = vunpack.c.l.b16 %v118
    %v290 = vunpack.c.h.b16 %v118
    %v291 = vunpack.c.l.b16 %v119
    %v292 = vunpack.c.h.b16 %v119
    %v293 = vunpack.c.l.b16 %v120
    %v294 = vunpack.c.h.b16 %v120
    %v295 = vunpack.c.l.b16 %v121
    %v296 = vunpack.c.h.b16 %v121
    %v297 = vunpack.c.l.b16 %v122
    %v298 = vunpack.c.h.b16 %v122
    %v299 = vunpack.c.l.b16 %v123
    %v300 = vunpack.c.h.b16 %v123
    %v301 = vunpack.c.l.b16 %v124
    %v302 = vunpack.c.h.b16 %v124
    %v303 = vunpack.c.l.b16 %v125
    %v304 = vunpack.c.h.b16 %v125
    %v305 = vunpack.c.l.b16 %v126
    %v306 = vunpack.c.h.b16 %v126
    %v307 = vunpack.c.l.b16 %v127
    %v308 = vunpack.c.h.b16 %v127
    %v309 = vunpack.c.l.b16 %v128
    %v310 = vunpack.c.h.b16 %v128
    %v311 = vunpack.c.l.b16 %v129
    %v312 = vunpack.c.h.b16 %v129
    %v313 = vpack.c.b16 %v289, %v281
    %v314 = vpack.c.b16 %v290, %v282
    %v315 = vpack.c.b16 %v291, %v283
    %v316 = vpack.c.b16 %v292, %v284
    %v317 = vpack.c.b16 %v293, %v285
    %v318 = vpack.c.b16 %v294, %v286
    %v319 = vpack.c.b16 %v295, %v287
    %v320 = vpack.c.b16 %v296, %v288
    %v321 = vpack.c.b16 %v305, %v297
    %v322 = vpack.c.b16 %v306, %v298
    %v323 = vpack.c.b16 %v307, %v299
    %v324 = vpack.c.b16 %v308, %v300
    %v325 = vpack.c.b16 %v309, %v301
    %v326 = vpack.c.b16 %v310, %v302
    %v327 = vpack.c.b16 %v311, %v303
    %v328 = vpack.c.b16 %v312, %v304
    %v473 = vunpack.c.l.b16 %v130
    %v474 = vunpack.c.l.b16 %v131
    %v475 = vunpack.c.l.b16 %v132
    %v476 = vunpack.c.l.b16 %v133
    %v477 = vunpack.c.l.b16 %v134
    %v478 = vunpack.c.l.b16 %v135
    %v479 = vunpack.c.l.b16 %v136
    %v480 = vunpack.c.l.b16 %v137
    %v481 = vunpack.c.l.b16 %v138
    %v482 = vunpack.c.l.b16 %v139
    %v483 = vunpack.c.l.b16 %v140
    %v484 = vunpack.c.l.b16 %v141
    %v485 = vunpack.c.l.b16 %v142
    %v486 = vunpack.c.l.b16 %v143
    %v487 = vunpack.c.l.b16 %v144
    %v488 = vunpack.c.l.b16 %v145
    %v489 = vunpack.c.l.b16 %v146
    %v490 = vunpack.c.l.b16 %v147
    %v491 = vunpack.c.l.b16 %v148
    %v492 = vunpack.c.l.b16 %v149
    %v493 = vunpack.c.l.b16 %v150
    %v494 = vunpack.c.l.b16 %v151
    %v495 = vunpack.c.l.b16 %v152
    %v496 = vunpack.c.l.b16 %v153
    %v497 = vunpack.c.l.b16 %v154
    %v498 = vunpack.c.l.b16 %v155
    %v499 = vunpack.c.l.b16 %v156
    %v500 = vunpack.c.l.b16 %v157
    %v501 = vunpack.c.l.b16 %v158
    %v502 = vunpack.c.l.b16 %v159
    %v503 = vunpack.c.l.b16 %v160
    %v504 = vunpack.c.l.b16 %v161
    %v505 = vunpack.c.l.b16 %v162
    %v506 = vunpack.c.l.b16 %v163
    %v507 = vunpack.c.l.b16 %v164
    %v508 = vunpack.c.l.b16 %v165
    %v509 = vunpack.c.l.b16 %v166
    %v510 = vunpack.c.l.b16 %v167
    %v511 = vunpack.c.l.b16 %v168
    %v512 = vunpack.c.l.b16 %v169
    %v513 = vunpack.c.l.b16 %v170
    %v514 = vunpack.c.l.b16 %v171
    %v515 = vunpack.c.l.b16 %v172
    %v516 = vunpack.c.l.b16 %v173
    %v517 = vunpack.c.l.b16 %v174
    %v518 = vunpack.c.l.b16 %v175
    %v519 = vunpack.c.l.b16 %v176
    %v520 = vunpack.c.l.b16 %v177
    %v521 = vunpack.c.l.b16 %v178
    %v522 = vunpack.c.l.b16 %v179
    %v523 = vunpack.c.l.b16 %v180
    %v524 = vunpack.c.l.b16 %v181
    %v525 = vunpack.c.l.b16 %v182
    %v526 = vunpack.c.l.b16 %v183
    %v527 = vunpack.c.l.b16 %v184
    %v528 = vunpack.c.l.b16 %v185
    %v529 = vunpack.c.l.b16 %v186
    %v530 = vunpack.c.l.b16 %v187
    %v531 = vunpack.c.l.b16 %v188
    %v532 = vunpack.c.l.b16 %v189
    %v533 = vunpack.c.l.b16 %v190
    %v534 = vunpack.c.l.b16 %v191
    %v535 = vunpack.c.l.b16 %v192
    %v536 = vunpack.c.l.b16 %v193
    %v537 = vunpack.c.l.b16 %v194
    %v538 = vunpack.c.l.b16 %v195
    %v539 = vunpack.c.l.b16 %v196
    %v540 = vunpack.c.l.b16 %v197
    %v541 = vunpack.c.l.b16 %v198
    %v542 = vunpack.c.l.b16 %v199
    %v543 = vunpack.c.l.b16 %v200
    %v544 = vunpack.c.l.b16 %v201
    %v545 = vunpack.c.l.b16 %v202
    %v546 = vunpack.c.l.b16 %v203
    %v547 = vunpack.c.l.b16 %v204
    %v548 = vunpack.c.l.b16 %v205
    %v549 = vunpack.c.l.b16 %v206
    %v550 = vunpack.c.l.b16 %v207
    %v551 = vunpack.c.l.b16 %v208
    %v552 = vunpack.c.l.b16 %v209
    %v553 = vunpack.c.l.b16 %v210
    %v554 = vunpack.c.l.b16 %v211
    %v555 = vunpack.c.l.b16 %v212
    %v556 = vunpack.c.l.b16 %v213
    %v557 = vunpack.c.l.b16 %v214
    %v558 = vunpack.c.l.b16 %v215
    %v559 = vunpack.c.l.b16 %v216
    %v560 = vunpack.c.l.b16 %v217
    %v561 = vunpack.c.l.b16 %v218
    %v562 = vunpack.c.l.b16 %v219
    %v563 = vunpack.c.l.b16 %v220
    %v564 = vunpack.c.l.b16 %v221
    %v565 = vunpack.c.l.b16 %v222
    %v566 = vunpack.c.l.b16 %v223
    %v567 = vunpack.c.l.b16 %v224
    %v568 = vunpack.c.l.b16 %v225
    %v569 = vunpack.c.l.b16 %v226
    %v570 = vunpack.c.l.b16 %v227
    %v571 = vunpack.c.l.b16 %v228
    %v572 = vunpack.c.l.b16 %v229
    %v573 = vunpack.c.l.b16 %v230
    %v574 = vunpack.c.l.b16 %v231
    %v575 = vunpack.c.l.b16 %v232
    %v576 = vunpack.c.l.b16 %v233
    %v577 = vunpack.c.l.b16 %v234
    %v578 = vunpack.c.l.b16 %v235
    %v579 = vunpack.c.l.b16 %v236
    %v580 = vunpack.c.l.b16 %v237
    %v581 = vunpack.c.l.b16 %v238
    %v582 = vunpack.c.l.b16 %v239
    %v583 = vunpack.c.l.b16 %v240
    %v584 = vunpack.c.l.b16 %v241
    %v585 = vunpack.c.l.b16 %v242
    %v586 = vunpack.c.l.b16 %v243
    %v587 = vunpack.c.l.b16 %v244
    %v588 = vunpack.c.l.b16 %v245
    %v589 = vunpack.c.l.b16 %v246
    %v590 = vunpack.c.l.b16 %v247
    %v591 = vunpack.c.l.b16 %v248
    %v592 = vunpack.c.l.b16 %v249
    %v593 = vunpack.c.l.b16 %v250
    %v594 = vunpack.c.l.b16 %v251
    %v595 = vunpack.c.l.b16 %v252
    %v596 = vunpack.c.l.b16 %v253
    %v597 = vunpack.c.l.b16 %v254
    %v598 = vunpack.c.l.b16 %v255
    %v599 = vunpack.c.l.b16 %v256
    %v600 = vunpack.c.l.b16 %v257
    %v601 = vpack.c.b16 %v474, %v473
    %v602 = vpack.c.b16 %v476, %v475
    %v603 = vpack.c.b16 %v478, %v477
    %v604 = vpack.c.b16 %v480, %v479
    %v605 = vpack.c.b16 %v482, %v481
    %v606 = vpack.c.b16 %v484, %v483
    %v607 = vpack.c.b16 %v486, %v485
    %v608 = vpack.c.b16 %v488, %v487
    %v609 = vpack.c.b16 %v490, %v489
    %v610 = vpack.c.b16 %v492, %v491
    %v611 = vpack.c.b16 %v494, %v493
    %v612 = vpack.c.b16 %v496, %v495
    %v613 = vpack.c.b16 %v498, %v497
    %v614 = vpack.c.b16 %v500, %v499
    %v615 = vpack.c.b16 %v502, %v501
    %v616 = vpack.c.b16 %v504, %v503
    %v617 = vpack.c.b16 %v506, %v505
    %v618 = vpack.c.b16 %v508, %v507
    %v619 = vpack.c.b16 %v510, %v509
    %v620 = vpack.c.b16 %v512, %v511
    %v621 = vpack.c.b16 %v514, %v513
    %v622 = vpack.c.b16 %v516, %v515
    %v623 = vpack.c.b16 %v518, %v517
    %v624 = vpack.c.b16 %v520, %v519
    %v625 = vpack.c.b16 %v522, %v521
    %v626 = vpack.c.b16 %v524, %v523
    %v627 = vpack.c.b16 %v526, %v525
    %v628 = vpack.c.b16 %v528, %v527
    %v629 = vpack.c.b16 %v530, %v529
    %v630 = vpack.c.b16 %v532, %v531
    %v631 = vpack.c.b16 %v534, %v533
    %v632 = vpack.c.b16 %v536, %v535
    %v633 = vpack.c.b16 %v538, %v537
    %v634 = vpack.c.b16 %v540, %v539
    %v635 = vpack.c.b16 %v542, %v541
    %v636 = vpack.c.b16 %v544, %v543
    %v637 = vpack.c.b16 %v546, %v545
    %v638 = vpack.c.b16 %v548, %v547
    %v639 = vpack.c.b16 %v550, %v549
    %v640 = vpack.c.b16 %v552, %v551
    %v641 = vpack.c.b16 %v554, %v553
    %v642 = vpack.c.b16 %v556, %v555
    %v643 = vpack.c.b16 %v558, %v557
    %v644 = vpack.c.b16 %v560, %v559
    %v645 = vpack.c.b16 %v562, %v561
    %v646 = vpack.c.b16 %v564, %v563
    %v647 = vpack.c.b16 %v566, %v565
    %v648 = vpack.c.b16 %v568, %v567
    %v649 = vpack.c.b16 %v570, %v569
    %v650 = vpack.c.b16 %v572, %v571
    %v651 = vpack.c.b16 %v574, %v573
    %v652 = vpack.c.b16 %v576, %v575
    %v653 = vpack.c.b16 %v578, %v577
    %v654 = vpack.c.b16 %v580, %v579
    %v655 = vpack.c.b16 %v582, %v581
    %v656 = vpack.c.b16 %v584, %v583
    %v657 = vpack.c.b16 %v586, %v585
    %v658 = vpack.c.b16 %v588, %v587
    %v659 = vpack.c.b16 %v590, %v589
    %v660 = vpack.c.b16 %v592, %v591
    %v661 = vpack.c.b16 %v594, %v593
    %v662 = vpack.c.b16 %v596, %v595
    %v663 = vpack.c.b16 %v598, %v597
    %v664 = vpack.c.b16 %v600, %v599
    %729 = vmatprep.subr.bf16.mxu0 0
    %730 = vmatpush1.bf16.msra.mxu0 %v601
    %731 = vmatprep.subr.bf16.mxu0 0
    %732 = vmatpush1.bf16.msra.mxu0 %v602
    %733 = vmatprep.subr.bf16.mxu0 0
    %734 = vmatpush1.bf16.msra.mxu0 %v603
    %735 = vmatprep.subr.bf16.mxu0 0
    %736 = vmatpush1.bf16.msra.mxu0 %v604
    %737 = vmatprep.subr.bf16.mxu0 0
    %738 = vmatpush1.bf16.msra.mxu0 %v605
    %739 = vmatprep.subr.bf16.mxu0 0
    %740 = vmatpush1.bf16.msra.mxu0 %v606
    %741 = vmatprep.subr.bf16.mxu0 0
    %742 = vmatpush1.bf16.msra.mxu0 %v607
    %743 = vmatprep.subr.bf16.mxu0 0
    %744 = vmatpush1.bf16.msra.mxu0 %v608
    %745 = vmatprep.subr.bf16.mxu0 0
    %746 = vmatpush1.bf16.msra.mxu0 %v609
    %747 = vmatprep.subr.bf16.mxu0 0
    %748 = vmatpush1.bf16.msra.mxu0 %v610
    %749 = vmatprep.subr.bf16.mxu0 0
    %750 = vmatpush1.bf16.msra.mxu0 %v611
    %751 = vmatprep.subr.bf16.mxu0 0
    %752 = vmatpush1.bf16.msra.mxu0 %v612
    %753 = vmatprep.subr.bf16.mxu0 0
    %754 = vmatpush1.bf16.msra.mxu0 %v613
    %755 = vmatprep.subr.bf16.mxu0 0
    %756 = vmatpush1.bf16.msra.mxu0 %v614
    %757 = vmatprep.subr.bf16.mxu0 0
    %758 = vmatpush1.bf16.msra.mxu0 %v615
    %759 = vmatprep.subr.bf16.mxu0 0
    %760 = vmatpush1.bf16.msra.mxu0 %v616
    %761 = vmatprep.mubr.bf16.mxu0 %v314
    %762 = vmatmul.mubr.bf16.gmra.mrb[0].mxu0 %v313
    %v763 = vpop.f32.mrb[0].mxu0
    %v764 = vadd.f32 %v263, %v763
    %v765 = vpop.f32.mrb[0].mxu0
    %v766 = vpop.f32.mrb[0].mxu0
    %v767 = vadd.f32 %v263, %v766
    %v768 = vpop.f32.mrb[0].mxu0
    %769 = vmatprep.mubr.bf16.mxu0 %v322
    %770 = vmatmul.mubr.bf16.gmra.mrb[0].mxu0 %v321
    %v771 = vpop.f32.mrb[0].mxu0
    %v772 = vadd.f32 %v263, %v771
    %v773 = vpop.f32.mrb[0].mxu0
    %v774 = vpop.f32.mrb[0].mxu0
    %v775 = vadd.f32 %v263, %v774
    %v776 = vpop.f32.mrb[0].mxu0
    %777 = vdwg.mxu0
    %778 = vmatprep.subr.bf16.mxu0 0
    %779 = vmatpush1.bf16.msra.mxu0 %v617
    %780 = vmatprep.subr.bf16.mxu0 0
    %781 = vmatpush1.bf16.msra.mxu0 %v618
    %782 = vmatprep.subr.bf16.mxu0 0
    %783 = vmatpush1.bf16.msra.mxu0 %v619
    %784 = vmatprep.subr.bf16.mxu0 0
    %785 = vmatpush1.bf16.msra.mxu0 %v620
    %786 = vmatprep.subr.bf16.mxu0 0
    %787 = vmatpush1.bf16.msra.mxu0 %v621
    %788 = vmatprep.subr.bf16.mxu0 0
    %789 = vmatpush1.bf16.msra.mxu0 %v622
    %790 = vmatprep.subr.bf16.mxu0 0
    %791 = vmatpush1.bf16.msra.mxu0 %v623
    %792 = vmatprep.subr.bf16.mxu0 0
    %793 = vmatpush1.bf16.msra.mxu0 %v624
    %794 = vmatprep.subr.bf16.mxu0 0
    %795 = vmatpush1.bf16.msra.mxu0 %v625
    %796 = vmatprep.subr.bf16.mxu0 0
    %797 = vmatpush1.bf16.msra.mxu0 %v626
    %798 = vmatprep.subr.bf16.mxu0 0
    %799 = vmatpush1.bf16.msra.mxu0 %v627
    %800 = vmatprep.subr.bf16.mxu0 0
    %801 = vmatpush1.bf16.msra.mxu0 %v628
    %802 = vmatprep.subr.bf16.mxu0 0
    %803 = vmatpush1.bf16.msra.mxu0 %v629
    %804 = vmatprep.subr.bf16.mxu0 0
    %805 = vmatpush1.bf16.msra.mxu0 %v630
    %806 = vmatprep.subr.bf16.mxu0 0
    %807 = vmatpush1.bf16.msra.mxu0 %v631
    %808 = vmatprep.subr.bf16.mxu0 0
    %809 = vmatpush1.bf16.msra.mxu0 %v632
    %810 = vmatprep.mubr.bf16.mxu0 %v316
    %811 = vmatmul.mubr.bf16.gmra.mrb[0].mxu0 %v315
    %v812 = vpop.f32.mrb[0].mxu0
    %v813 = vadd.f32 %v764, %v812
    %v814 = vpop.f32.mrb[0].mxu0
    %v815 = vpop.f32.mrb[0].mxu0
    %v816 = vadd.f32 %v767, %v815
    %v817 = vpop.f32.mrb[0].mxu0
    %818 = vmatprep.mubr.bf16.mxu0 %v324
    %819 = vmatmul.mubr.bf16.gmra.mrb[0].mxu0 %v323
    %v820 = vpop.f32.mrb[0].mxu0
    %v821 = vadd.f32 %v772, %v820
    %v822 = vpop.f32.mrb[0].mxu0
    %v823 = vpop.f32.mrb[0].mxu0
    %v824 = vadd.f32 %v775, %v823
    %v825 = vpop.f32.mrb[0].mxu0
    %826 = vdwg.mxu0
    %827 = vmatprep.subr.bf16.mxu0 0
    %828 = vmatpush1.bf16.msra.mxu0 %v633
    %829 = vmatprep.subr.bf16.mxu0 0
    %830 = vmatpush1.bf16.msra.mxu0 %v634
    %831 = vmatprep.subr.bf16.mxu0 0
    %832 = vmatpush1.bf16.msra.mxu0 %v635
    %833 = vmatprep.subr.bf16.mxu0 0
    %834 = vmatpush1.bf16.msra.mxu0 %v636
    %835 = vmatprep.subr.bf16.mxu0 0
    %836 = vmatpush1.bf16.msra.mxu0 %v637
    %837 = vmatprep.subr.bf16.mxu0 0
    %838 = vmatpush1.bf16.msra.mxu0 %v638
    %839 = vmatprep.subr.bf16.mxu0 0
    %840 = vmatpush1.bf16.msra.mxu0 %v639
    %841 = vmatprep.subr.bf16.mxu0 0
    %842 = vmatpush1.bf16.msra.mxu0 %v640
    %843 = vmatprep.subr.bf16.mxu0 0
    %844 = vmatpush1.bf16.msra.mxu0 %v641
    %845 = vmatprep.subr.bf16.mxu0 0
    %846 = vmatpush1.bf16.msra.mxu0 %v642
    %847 = vmatprep.subr.bf16.mxu0 0
    %848 = vmatpush1.bf16.msra.mxu0 %v643
    %849 = vmatprep.subr.bf16.mxu0 0
    %850 = vmatpush1.bf16.msra.mxu0 %v644
    %851 = vmatprep.subr.bf16.mxu0 0
    %852 = vmatpush1.bf16.msra.mxu0 %v645
    %853 = vmatprep.subr.bf16.mxu0 0
    %854 = vmatpush1.bf16.msra.mxu0 %v646
    %855 = vmatprep.subr.bf16.mxu0 0
    %856 = vmatpush1.bf16.msra.mxu0 %v647
    %857 = vmatprep.subr.bf16.mxu0 0
    %858 = vmatpush1.bf16.msra.mxu0 %v648
    %859 = vmatprep.mubr.bf16.mxu0 %v318
    %860 = vmatmul.mubr.bf16.gmra.mrb[0].mxu0 %v317
    %v861 = vpop.f32.mrb[0].mxu0
    %v862 = vadd.f32 %v813, %v861
    %v863 = vpop.f32.mrb[0].mxu0
    %v864 = vpop.f32.mrb[0].mxu0
    %v865 = vadd.f32 %v816, %v864
    %v866 = vpop.f32.mrb[0].mxu0
    %867 = vmatprep.mubr.bf16.mxu0 %v326
    %868 = vmatmul.mubr.bf16.gmra.mrb[0].mxu0 %v325
    %v869 = vpop.f32.mrb[0].mxu0
    %v870 = vadd.f32 %v821, %v869
    %v871 = vpop.f32.mrb[0].mxu0
    %v872 = vpop.f32.mrb[0].mxu0
    %v873 = vadd.f32 %v824, %v872
    %v874 = vpop.f32.mrb[0].mxu0
    %875 = vdwg.mxu0
    %876 = vmatprep.subr.bf16.mxu0 0
    %877 = vmatpush1.bf16.msra.mxu0 %v649
    %878 = vmatprep.subr.bf16.mxu0 0
    %879 = vmatpush1.bf16.msra.mxu0 %v650
    %880 = vmatprep.subr.bf16.mxu0 0
    %881 = vmatpush1.bf16.msra.mxu0 %v651
    %882 = vmatprep.subr.bf16.mxu0 0
    %883 = vmatpush1.bf16.msra.mxu0 %v652
    %884 = vmatprep.subr.bf16.mxu0 0
    %885 = vmatpush1.bf16.msra.mxu0 %v653
    %886 = vmatprep.subr.bf16.mxu0 0
    %887 = vmatpush1.bf16.msra.mxu0 %v654
    %888 = vmatprep.subr.bf16.mxu0 0
    %889 = vmatpush1.bf16.msra.mxu0 %v655
    %890 = vmatprep.subr.bf16.mxu0 0
    %891 = vmatpush1.bf16.msra.mxu0 %v656
    %892 = vmatprep.subr.bf16.mxu0 0
    %893 = vmatpush1.bf16.msra.mxu0 %v657
    %894 = vmatprep.subr.bf16.mxu0 0
    %895 = vmatpush1.bf16.msra.mxu0 %v658
    %896 = vmatprep.subr.bf16.mxu0 0
    %897 = vmatpush1.bf16.msra.mxu0 %v659
    %898 = vmatprep.subr.bf16.mxu0 0
    %899 = vmatpush1.bf16.msra.mxu0 %v660
    %900 = vmatprep.subr.bf16.mxu0 0
    %901 = vmatpush1.bf16.msra.mxu0 %v661
    %902 = vmatprep.subr.bf16.mxu0 0
    %903 = vmatpush1.bf16.msra.mxu0 %v662
    %904 = vmatprep.subr.bf16.mxu0 0
    %905 = vmatpush1.bf16.msra.mxu0 %v663
    %906 = vmatprep.subr.bf16.mxu0 0
    %907 = vmatpush1.bf16.msra.mxu0 %v664
    %908 = vmatprep.mubr.bf16.mxu0 %v320
    %909 = vmatmul.mubr.bf16.gmra.mrb[0].mxu0 %v319
    %v910 = vpop.f32.mrb[0].mxu0
    %v911 = vadd.f32 %v862, %v910
    %v912 = vpop.f32.mrb[0].mxu0
    %v913 = vpop.f32.mrb[0].mxu0
    %v914 = vadd.f32 %v865, %v913
    %v915 = vpop.f32.mrb[0].mxu0
    %916 = vmatprep.mubr.bf16.mxu0 %v328
    %917 = vmatmul.mubr.bf16.gmra.mrb[0].mxu0 %v327
    %v918 = vpop.f32.mrb[0].mxu0
    %v919 = vadd.f32 %v870, %v918
    %v920 = vpop.f32.mrb[0].mxu0
    %v921 = vpop.f32.mrb[0].mxu0
    %v922 = vadd.f32 %v873, %v921
    %v923 = vpop.f32.mrb[0].mxu0
    %924 = vdwg.mxu0
    %v925 = vmax.f32 %v911, 0.0
    %v926 = vmax.f32 %v914, 0.0
    %v927 = vmax.f32 %v919, 0.0
    %v928 = vmax.f32 %v922, 0.0
    %v929 = vpack.c.bf16 %v926, %v925
    %v930 = vpack.c.bf16 %v928, %v927
    %v931 = vld [vmem:[%s3] sm:$0xf]
    %v932 = vld [vmem:[%s3 + $0x4] sm:$0xf]
    %v933 = vld [vmem:[%s3 + $0x8] sm:$0xf]
    %v934 = vld [vmem:[%s3 + $0xc] sm:$0xf]
    %v935 = vld [vmem:[%s3 + $0x10] sm:$0xf]
    %v936 = vld [vmem:[%s3 + $0x14] sm:$0xf]
    %v937 = vld [vmem:[%s3 + $0x18] sm:$0xf]
    %v938 = vld [vmem:[%s3 + $0x1c] sm:$0xf]
    %v939 = vld [vmem:[%s3 + $0x20] sm:$0xf]
    %v940 = vld [vmem:[%s3 + $0x24] sm:$0xf]
    %v941 = vld [vmem:[%s3 + $0x28] sm:$0xf]
    %v942 = vld [vmem:[%s3 + $0x2c] sm:$0xf]
    %v943 = vld [vmem:[%s3 + $0x30] sm:$0xf]
    %v944 = vld [vmem:[%s3 + $0x34] sm:$0xf]
    %v945 = vld [vmem:[%s3 + $0x38] sm:$0xf]
    %v946 = vld [vmem:[%s3 + $0x3c] sm:$0xf]
    %v947 = vld [vmem:[%s4] sm:$0x1]
    %v949 = vlaneseq
    %v950 = vshrl.u32 %v949, 7
    %v951 = vsub.s32 0, %v950
    %v952 = vrot.slane %v947, %v951
    %v970 = vunpack.c.l.b16 %v931
    %v971 = vunpack.c.l.b16 %v932
    %v972 = vunpack.c.l.b16 %v933
    %v973 = vunpack.c.l.b16 %v934
    %v974 = vunpack.c.l.b16 %v935
    %v975 = vunpack.c.l.b16 %v936
    %v976 = vunpack.c.l.b16 %v937
    %v977 = vunpack.c.l.b16 %v938
    %v978 = vunpack.c.l.b16 %v939
    %v979 = vunpack.c.l.b16 %v940
    %v980 = vunpack.c.l.b16 %v941
    %v981 = vunpack.c.l.b16 %v942
    %v982 = vunpack.c.l.b16 %v943
    %v983 = vunpack.c.l.b16 %v944
    %v984 = vunpack.c.l.b16 %v945
    %v985 = vunpack.c.l.b16 %v946
    %v986 = vpack.c.b16 %v971, %v970
    %v987 = vpack.c.b16 %v973, %v972
    %v988 = vpack.c.b16 %v975, %v974
    %v989 = vpack.c.b16 %v977, %v976
    %v990 = vpack.c.b16 %v979, %v978
    %v991 = vpack.c.b16 %v981, %v980
    %v992 = vpack.c.b16 %v983, %v982
    %v993 = vpack.c.b16 %v985, %v984
    %1002 = vmatprep.subr.bf16.mxu0 0
    %1003 = vmatpush1.bf16.msra.mxu0 %v986
    %1004 = vmatprep.subr.bf16.mxu0 0
    %1005 = vmatpush1.bf16.msra.mxu0 %v987
    %1006 = vmatprep.subr.bf16.mxu0 0
    %1007 = vmatpush1.bf16.msra.mxu0 %v988
    %1008 = vmatprep.subr.bf16.mxu0 0
    %1009 = vmatpush1.bf16.msra.mxu0 %v989
    %1010 = vmatprep.subr.bf16.mxu0 0
    %1011 = vmatpush1.bf16.msra.mxu0 %v990
    %1012 = vmatprep.subr.bf16.mxu0 0
    %1013 = vmatpush1.bf16.msra.mxu0 %v991
    %1014 = vmatprep.subr.bf16.mxu0 0
    %1015 = vmatpush1.bf16.msra.mxu0 %v992
    %1016 = vmatprep.subr.bf16.mxu0 0
    %1017 = vmatpush1.bf16.msra.mxu0 %v993
    %1018 = vmatprep.subr.bf16.mxu0 0
    %1019 = vmatpush1.bf16.msra.mxu0 0
    %1020 = vmatprep.subr.bf16.mxu0 0
    %1021 = vmatpush1.bf16.msra.mxu0 0
    %1022 = vmatprep.subr.bf16.mxu0 0
    %1023 = vmatpush1.bf16.msra.mxu0 0
    %1024 = vmatprep.subr.bf16.mxu0 0
    %1025 = vmatpush1.bf16.msra.mxu0 0
    %1026 = vmatprep.subr.bf16.mxu0 0
    %1027 = vmatpush1.bf16.msra.mxu0 0
    %1028 = vmatprep.subr.bf16.mxu0 0
    %1029 = vmatpush1.bf16.msra.mxu0 0
    %1030 = vmatprep.subr.bf16.mxu0 0
    %1031 = vmatpush1.bf16.msra.mxu0 0
    %1032 = vmatprep.subr.bf16.mxu0 0
    %1033 = vmatpush1.bf16.msra.mxu0 0
    %1034 = vmatprep.mubr.bf16.mxu0 0
    %1035 = vmatmul.mubr.bf16.gmra.mrb[0].mxu0 %v929
    %v1036 = vpop.f32.mrb[0].mxu0
    %v1037 = vadd.f32 %v952, %v1036
    %v1038 = vpop.f32.mrb[0].mxu0
    %v1039 = vpop.f32.mrb[0].mxu0
    %v1040 = vadd.f32 %v952, %v1039
    %v1041 = vpop.f32.mrb[0].mxu0
    %1042 = vmatprep.mubr.bf16.mxu0 0
    %1043 = vmatmul.mubr.bf16.gmra.mrb[0].mxu0 %v930
    %v1044 = vpop.f32.mrb[0].mxu0
    %v1045 = vadd.f32 %v952, %v1044
    %v1046 = vpop.f32.mrb[0].mxu0
    %v1047 = vpop.f32.mrb[0].mxu0
    %v1048 = vadd.f32 %v952, %v1047
    %v1049 = vpop.f32.mrb[0].mxu0
    %1050 = vdwg.mxu0
    %v1051 = vmax.f32 %v1037, 0.0
    %v1052 = vmax.f32 %v1040, 0.0
    %v1053 = vmax.f32 %v1045, 0.0
    %v1054 = vmax.f32 %v1048, 0.0
    %v1055 = vpack.c.bf16 %v1052, %v1051
    %v1056 = vpack.c.bf16 %v1054, %v1053
    %v1057 = vld [vmem:[%s5] sm:$0xf]
    %v1058 = vld [vmem:[%s5 + $0x4] sm:$0xf]
    %v1059 = vld [vmem:[%s5 + $0x8] sm:$0xf]
    %v1060 = vld [vmem:[%s5 + $0xc] sm:$0xf]
    %v1061 = vld [vmem:[%s6] sm:$0x1]
    %v1063 = vlaneseq
    %v1064 = vshrl.u32 %v1063, 7
    %v1065 = vsub.s32 0, %v1064
    %v1066 = vrot.slane %v1061, %v1065
    %v1072 = vunpack.c.l.b16 %v1057
    %v1073 = vunpack.c.l.b16 %v1058
    %v1074 = vunpack.c.l.b16 %v1059
    %v1075 = vunpack.c.l.b16 %v1060
    %v1076 = vpack.c.b16 %v1073, %v1072
    %v1077 = vpack.c.b16 %v1075, %v1074
    %vm1080 = vcmask 261120
    %v1082 = vsel %vm1080, %v1055, 0
    %v1085 = vsel %vm1080, %v1056, 0
    %1087 = vmatprep.subr.bf16.mxu0 0
    %1088 = vmatpush1.bf16.msra.mxu0 %v1076
    %1089 = vmatprep.subr.bf16.mxu0 0
    %1090 = vmatpush1.bf16.msra.mxu0 %v1077
    %1091 = vmatprep.subr.bf16.mxu0 0
    %1092 = vmatpush1.bf16.msra.mxu0 0
    %1093 = vmatprep.subr.bf16.mxu0 0
    %1094 = vmatpush1.bf16.msra.mxu0 0
    %1095 = vmatprep.subr.bf16.mxu0 0
    %1096 = vmatpush1.bf16.msra.mxu0 0
    %1097 = vmatprep.subr.bf16.mxu0 0
    %1098 = vmatpush1.bf16.msra.mxu0 0
    %1099 = vmatprep.subr.bf16.mxu0 0
    %1100 = vmatpush1.bf16.msra.mxu0 0
    %1101 = vmatprep.subr.bf16.mxu0 0
    %1102 = vmatpush1.bf16.msra.mxu0 0
    %1103 = vmatprep.subr.bf16.mxu0 0
    %1104 = vmatpush1.bf16.msra.mxu0 0
    %1105 = vmatprep.subr.bf16.mxu0 0
    %1106 = vmatpush1.bf16.msra.mxu0 0
    %1107 = vmatprep.subr.bf16.mxu0 0
    %1108 = vmatpush1.bf16.msra.mxu0 0
    %1109 = vmatprep.subr.bf16.mxu0 0
    %1110 = vmatpush1.bf16.msra.mxu0 0
    %1111 = vmatprep.subr.bf16.mxu0 0
    %1112 = vmatpush1.bf16.msra.mxu0 0
    %1113 = vmatprep.subr.bf16.mxu0 0
    %1114 = vmatpush1.bf16.msra.mxu0 0
    %1115 = vmatprep.subr.bf16.mxu0 0
    %1116 = vmatpush1.bf16.msra.mxu0 0
    %1117 = vmatprep.subr.bf16.mxu0 0
    %1118 = vmatpush1.bf16.msra.mxu0 0
    %1119 = vmatprep.mubr.bf16.mxu0 0
    %1120 = vmatmul.mubr.bf16.gmra.mrb[0].mxu0 %v1082
    %v1121 = vpop.f32.mrb[0].mxu0
    %v1122 = vadd.f32 %v1066, %v1121
    %v1123 = vpop.f32.mrb[0].mxu0
    %v1124 = vpop.f32.mrb[0].mxu0
    %v1125 = vadd.f32 %v1066, %v1124
    %v1126 = vpop.f32.mrb[0].mxu0
    %1127 = vmatprep.mubr.bf16.mxu0 0
    %1128 = vmatmul.mubr.bf16.gmra.mrb[0].mxu0 %v1085
    %v1129 = vpop.f32.mrb[0].mxu0
    %v1130 = vadd.f32 %v1066, %v1129
    %v1131 = vpop.f32.mrb[0].mxu0
    %v1132 = vpop.f32.mrb[0].mxu0
    %v1133 = vadd.f32 %v1066, %v1132
    %v1134 = vpop.f32.mrb[0].mxu0
    %1135 = vdwg.mxu0
    %v1136 = vpack.c.bf16 %v1125, %v1122
    %v1137 = vpack.c.bf16 %v1133, %v1130
    %v1140 = vcombine.high %v1136, %v1136
    %v1142 = vunpack.c.l.s4 1966171168
    %v1143 = vunpack.c.0.s8 %v1142
    %v1144 = vlaneseq
    %v1145 = vshrl.u32 %v1144, 7
    %v1146 = vsub.s32 %v1143, %v1145
    %v1147 = vrot.slane %v1136, %v1146
    %v1149 = vunpack.c.l.s4 1966171168
    %v1150 = vunpack.c.0.s8 %v1149
    %v1151 = vlaneseq
    %v1152 = vshrl.u32 %v1151, 7
    %v1153 = vsub.s32 %v1150, %v1152
    %v1154 = vrot.slane %v1140, %v1153
    %v1155 = vcombine.high %v1147, %v1147
    %v1156 = vcombine.high %v1154, %v1154
    %v1158 = vunpack.c.l.s4 1966171168
    %v1159 = vunpack.c.0.s8 %v1158
    %v1160 = vlaneseq
    %v1161 = vshrl.u32 %v1160, 7
    %v1162 = vsub.s32 %v1159, %v1161
    %v1163 = vrot.slane %v1147, %v1162
    %v1165 = vunpack.c.l.s4 1966171168
    %v1166 = vunpack.c.0.s8 %v1165
    %v1167 = vlaneseq
    %v1168 = vshrl.u32 %v1167, 7
    %v1169 = vsub.s32 %v1166, %v1168
    %v1170 = vrot.slane %v1154, %v1169
    %v1172 = vunpack.c.l.s4 1966171168
    %v1173 = vunpack.c.0.s8 %v1172
    %v1174 = vlaneseq
    %v1175 = vshrl.u32 %v1174, 7
    %v1176 = vsub.s32 %v1173, %v1175
    %v1177 = vrot.slane %v1155, %v1176
    %v1179 = vunpack.c.l.s4 1966171168
    %v1180 = vunpack.c.0.s8 %v1179
    %v1181 = vlaneseq
    %v1182 = vshrl.u32 %v1181, 7
    %v1183 = vsub.s32 %v1180, %v1182
    %v1184 = vrot.slane %v1156, %v1183
    %v1185 = vcombine.high %v1163, %v1163
    %v1186 = vcombine.high %v1170, %v1170
    %v1187 = vcombine.high %v1177, %v1177
    %v1188 = vcombine.high %v1184, %v1184
    %v1189 = vcombine.high %v1137, %v1137
    %v1191 = vunpack.c.l.s4 1966171168
    %v1192 = vunpack.c.0.s8 %v1191
    %v1193 = vlaneseq
    %v1194 = vshrl.u32 %v1193, 7
    %v1195 = vsub.s32 %v1192, %v1194
    %v1196 = vrot.slane %v1137, %v1195
    %v1198 = vunpack.c.l.s4 1966171168
    %v1199 = vunpack.c.0.s8 %v1198
    %v1200 = vlaneseq
    %v1201 = vshrl.u32 %v1200, 7
    %v1202 = vsub.s32 %v1199, %v1201
    %v1203 = vrot.slane %v1189, %v1202
    %v1204 = vcombine.high %v1196, %v1196
    %v1205 = vcombine.high %v1203, %v1203
    %v1207 = vunpack.c.l.s4 1966171168
    %v1208 = vunpack.c.0.s8 %v1207
    %v1209 = vlaneseq
    %v1210 = vshrl.u32 %v1209, 7
    %v1211 = vsub.s32 %v1208, %v1210
    %v1212 = vrot.slane %v1196, %v1211
    %v1214 = vunpack.c.l.s4 1966171168
    %v1215 = vunpack.c.0.s8 %v1214
    %v1216 = vlaneseq
    %v1217 = vshrl.u32 %v1216, 7
    %v1218 = vsub.s32 %v1215, %v1217
    %v1219 = vrot.slane %v1203, %v1218
    %v1221 = vunpack.c.l.s4 1966171168
    %v1222 = vunpack.c.0.s8 %v1221
    %v1223 = vlaneseq
    %v1224 = vshrl.u32 %v1223, 7
    %v1225 = vsub.s32 %v1222, %v1224
    %v1226 = vrot.slane %v1204, %v1225
    %v1228 = vunpack.c.l.s4 1966171168
    %v1229 = vunpack.c.0.s8 %v1228
    %v1230 = vlaneseq
    %v1231 = vshrl.u32 %v1230, 7
    %v1232 = vsub.s32 %v1229, %v1231
    %v1233 = vrot.slane %v1205, %v1232
    %v1234 = vcombine.high %v1212, %v1212
    %v1235 = vcombine.high %v1219, %v1219
    %v1236 = vcombine.high %v1226, %v1226
    %v1237 = vcombine.high %v1233, %v1233
    %1254 = vst [vmem:[#allocation5] sm:$0x1] %v1163
    %1255 = vst [vmem:[#allocation5 + $0x1] sm:$0x1] %v1177
    %1256 = vst [vmem:[#allocation5 + $0x2] sm:$0x1] %v1185
    %1257 = vst [vmem:[#allocation5 + $0x3] sm:$0x1] %v1187
    %1258 = vst [vmem:[#allocation5 + $0x4] sm:$0x1] %v1170
    %1259 = vst [vmem:[#allocation5 + $0x5] sm:$0x1] %v1184
    %1260 = vst [vmem:[#allocation5 + $0x6] sm:$0x1] %v1186
    %1261 = vst [vmem:[#allocation5 + $0x7] sm:$0x1] %v1188
    %1262 = vst [vmem:[#allocation5 + $0x8] sm:$0x1] %v1212
    %1263 = vst [vmem:[#allocation5 + $0x9] sm:$0x1] %v1226
    %1264 = vst [vmem:[#allocation5 + $0xa] sm:$0x1] %v1234
    %1265 = vst [vmem:[#allocation5 + $0xb] sm:$0x1] %v1236
    %1266 = vst [vmem:[#allocation5 + $0xc] sm:$0x1] %v1219
    %1267 = vst [vmem:[#allocation5 + $0xd] sm:$0x1] %v1233
    %1268 = vst [vmem:[#allocation5 + $0xe] sm:$0x1] %v1235
    %1269 = vst [vmem:[#allocation5 + $0xf] sm:$0x1] %v1237
    // Predicated region
    $region34: #{tpu_custom_call.1} parent=1 // pred_check
      _
    $region35: #{tpu_custom_call.1} parent=1 // pred_check_branch
      %1271 = sbr.rel (0) target = $region37
    $region36: #{tpu_custom_call.1} parent=1 // pred_region
      %s1273 = ssub.s32 256, 16
      %1274 = vsyncadd [#allocation4], %s1273
      %s1275 = sshll.u32 [#allocation5], 4
      %s1276 = int_to_ptr.vmem [resolvable:$true] %s1275
      %1281 = dma.vmem_to_hbm [thread:$0]  %s1276, 16, %s7, [#allocation4], 16, 16, 1
    $region37: #{tpu_custom_call.1} parent=1 // pred_fallthru
      _
    // Predicated region
    $region38: #{tpu_custom_call.1} parent=1 // pred_check
      _
    $region39: #{tpu_custom_call.1} parent=1 // pred_check_branch
      %1283 = sbr.rel (0) target = $region41
    $region40: #{tpu_custom_call.1} parent=1 // pred_region
      %1284 = dma.done [#allocation4], 256
    $region41: #{tpu_custom_call.1} parent=1 // pred_fallthru
      _
    %1285 = vsyncpa [#allocation3], 1
    %1286 = vsyncpa [#allocation4], 1

</llo_original>
